<compile_context>
chip_gen: v7x
topology: tpu7x:2x2x1
jax: 0.10.0
libtpu: 0.0.40
codegen_flags: <defaults>
</compile_context>

<pallas_src>
import functools

import jax
import jax.numpy as jnp
from jax import lax
from jax.experimental import pallas as pl
from jax.experimental.pallas import tpu as pltpu


_NBUF = 16  # HBM-gather pipeline depth (15 outstanding row DMAs)


def _round_up(x, m):
    return (x + m - 1) // m * m


def _choose_tile_b(batch, tile_b):
    """Batch tile: multiple of 8, small padding waste, >=2 grid steps if possible."""
    b8 = _round_up(batch, 8)
    tb = min(_round_up(tile_b, 8), b8)
    if b8 > 8 and b8 <= tb:
        # A single-step grid cannot be sharded across v7x's two TensorCores.
        tb = _round_up((b8 + 1) // 2, 8)
    return tb


def _mlp_epilogue(acc_ref, w1_ref, b1_ref, w2_ref, b2_ref, out_ref, inv_seq):
    """mean -> fc1 -> relu -> (dropout = identity) -> fc2 on the MXU tile."""
    mean = acc_ref[...] * inv_seq                                     # [TB, D]
    h = jnp.dot(mean, w1_ref[...],
                preferred_element_type=jnp.float32) + b1_ref[...]     # fc1
    h = jnp.maximum(h, 0.0)                                           # relu
    out = jnp.dot(h, w2_ref[...],
                  preferred_element_type=jnp.float32) + b2_ref[...]   # fc2
    out_ref[...] = out.astype(out_ref.dtype)


def _make_vmem_kernel(seq_len, batch_valid, pad_batch, inner_unroll):
    """Gather path with the embedding table resident in VMEM."""

    def kernel(tok_ref,               # SMEM [B_pad*S] int32 (scalar prefetch)
               emb_ref,               # VMEM [V, D]  (fetched once, constant index_map)
               w1_ref, b1_ref, w2_ref, b2_ref,
               out_ref,               # VMEM [TB, Cp]
               acc_ref):              # VMEM [TB, D] f32
        TB, D = acc_ref.shape
        row0 = pl.program_id(0) * TB
        nb = jnp.minimum(TB, batch_valid - row0)      # valid rows in this tile
        if pad_batch:                                  # static: only if padding exists
            acc_ref[...] = jnp.zeros_like(acc_ref)

        def row_body(b, carry):
            t0 = (row0 + b) * seq_len

            def tok_body(s, rowsum):
                row = tok_ref[t0 + s]
                return rowsum + emb_ref[pl.ds(row, 1), :].astype(jnp.float32)

            rowsum = lax.fori_loop(0, seq_len, tok_body,
                                   jnp.zeros((1, D), jnp.float32),
                                   unroll=inner_unroll)
            acc_ref[pl.ds(b, 1), :] = rowsum
            return carry

        lax.fori_loop(0, nb, row_body, 0)
        _mlp_epilogue(acc_ref, w1_ref, b1_ref, w2_ref, b2_ref, out_ref,
                      jnp.float32(1.0 / seq_len))

    return kernel


def _make_hbm_kernel(seq_len, batch_valid, total_tokens, pad_batch, inner_unroll):
    """Gather path with the table in HBM and a deep (15-outstanding) DMA pipeline."""

    def kernel(tok_ref,               # SMEM [B_pad*S] int32 (scalar prefetch)
               emb_hbm,               # HBM  [V, D]   (memory_space=pl.ANY)
               w1_ref, b1_ref, w2_ref, b2_ref,
               out_ref,               # VMEM [TB, Cp]
               rowbuf, sem, acc_ref):
        TB, D = acc_ref.shape
        row0 = pl.program_id(0) * TB
        nb = jnp.minimum(TB, batch_valid - row0)      # valid rows in this tile
        n_tok = nb * seq_len                          # valid tokens in this tile
        base = pl.program_id(0) * TB * seq_len
        if pad_batch:
            acc_ref[...] = jnp.zeros_like(acc_ref)

        def start_fetch(tok_row, slot):
            pltpu.make_async_copy(
                emb_hbm.at[pl.ds(tok_row, 1), :], rowbuf.at[slot], sem.at[slot]
            ).start()

        def wait_fetch(slot):
            # Dummy src slice of matching [1, D] shape/dtype; only the byte
            # count of the descriptor matters for the wait.
            pltpu.make_async_copy(
                emb_hbm.at[pl.ds(0, 1), :], rowbuf.at[slot], sem.at[slot]
            ).wait()

        # Prime NBUF-1 outstanding fetches; one slot of slack guarantees a
        # refill never targets the slot consumed in the same iteration.
        for j in range(_NBUF - 1):
            @pl.when(j < n_tok)
            def _(j=j):
                start_fetch(tok_ref[base + j], j)

        def row_body(b, carry):
            def tok_body(s, rowsum):
                t = b * seq_len + s
                slot = t & (_NBUF - 1)
                t_f = t + (_NBUF - 1)          # token refilled into slot (t-1) % NBUF
                # Hoist the SMEM id read above the DMA wait (sst->sld forwarding).
                nxt_row = tok_ref[jnp.minimum(base + t_f, total_tokens - 1)]
                wait_fetch(slot)
                rowsum = rowsum + rowbuf[slot].astype(jnp.float32)

                @pl.when(t_f < n_tok)
                def _():
                    start_fetch(nxt_row, t_f & (_NBUF - 1))

                return rowsum

            rowsum = lax.fori_loop(0, seq_len, tok_body,
                                   jnp.zeros((1, D), jnp.float32),
                                   unroll=inner_unroll)
            acc_ref[pl.ds(b, 1), :] = rowsum
            return carry

        lax.fori_loop(0, nb, row_body, 0)
        _mlp_epilogue(acc_ref, w1_ref, b1_ref, w2_ref, b2_ref, out_ref,
                      jnp.float32(1.0 / seq_len))

    return kernel


def fasttext_forward(token_ids, seq_lens, params, *, tile_b=128,
                     force_hbm_gather=False,
                     vmem_budget_bytes=40 * 1024 * 1024):
    """token_ids: [B, S] int32, seq_lens: [B] int32 (unused, matches reference)."""
    del seq_lens  # unused in the PyTorch forward as well
    emb = params["embedding"]                # [V, D]
    w1, b1 = params["w1"], params["b1"]      # [D, D], [1, D]   (w stored in x out)
    w2, b2 = params["w2"], params["b2"]      # [D, C], [1, C]

    B, S = token_ids.shape
    V, D = emb.shape
    C = w2.shape[1]

    TB = _choose_tile_b(B, tile_b)
    B_pad = _round_up(B, TB)
    C_pad = _round_up(C, 128)                # lane-dense output slab
    pad_batch = B_pad != B

    tok = token_ids.astype(jnp.int32)
    if pad_batch:
        tok = jnp.pad(tok, ((0, B_pad - B), (0, 0)))
    tok = tok.reshape(-1)                    # 1-D ids: SMEM pads to pow2, not [*,128]

    w2p = jnp.pad(w2, ((0, 0), (0, C_pad - C))) if C_pad != C else w2
    b2p = jnp.pad(b2, ((0, 0), (0, C_pad - C))) if C_pad != C else b2

    itemsize = jnp.dtype(emb.dtype).itemsize
    table_bytes = V * D * itemsize
    # weights/out are double-buffered by the pipeline; acc is a single scratch.
    fixed_bytes = (2 * (D * D + D + D * C_pad + C_pad) * 4
                   + TB * D * 4 + 2 * TB * C_pad * 4 + (1 << 20))
    resident = (not force_hbm_gather) and (
        2 * table_bytes + fixed_bytes <= vmem_budget_bytes)

    inner_unroll = S <= 64
    if resident:
        kernel = _make_vmem_kernel(S, B, pad_batch, inner_unroll)
        emb_spec = pl.BlockSpec((V, D), lambda bt, tok_r: (0, 0))     # VMEM-resident
        scratch = [pltpu.VMEM((TB, D), jnp.float32)]
        vmem_need = 2 * table_bytes + fixed_bytes
    else:
        kernel = _make_hbm_kernel(S, B, B_pad * S, pad_batch, inner_unroll)
        emb_spec = pl.BlockSpec(memory_space=pl.ANY)                  # stays in HBM
        scratch = [pltpu.VMEM((_NBUF, 1, D), emb.dtype),
                   pltpu.SemaphoreType.DMA((_NBUF,)),
                   pltpu.VMEM((TB, D), jnp.float32)]
        vmem_need = _NBUF * D * itemsize + fixed_bytes

    vmem_limit = int(min(max(vmem_need + (2 << 20), 16 << 20), 48 << 20))

    gather_bytes = table_bytes if resident else B_pad * S * D * itemsize
    flops = int(B_pad * S * D + 2 * B_pad * D * (D + C_pad))
    bytes_accessed = int(gather_bytes + B_pad * S * 4
                         + (D * D + D + D * C_pad + C_pad) * 4
                         + B_pad * C_pad * 4)

    out = pl.pallas_call(
        kernel,
        out_shape=jax.ShapeDtypeStruct((B_pad, C_pad), jnp.float32),
        grid_spec=pltpu.PrefetchScalarGridSpec(
            num_scalar_prefetch=1,
            grid=(B_pad // TB,),
            in_specs=[
                emb_spec,                                             # emb table
                pl.BlockSpec((D, D), lambda bt, tok_r: (0, 0)),       # w1
                pl.BlockSpec((1, D), lambda bt, tok_r: (0, 0)),       # b1
                pl.BlockSpec((D, C_pad), lambda bt, tok_r: (0, 0)),   # w2 (padded)
                pl.BlockSpec((1, C_pad), lambda bt, tok_r: (0, 0)),   # b2 (padded)
            ],
            out_specs=pl.BlockSpec((TB, C_pad), lambda bt, tok_r: (bt, 0)),
            scratch_shapes=scratch,
        ),
        compiler_params=pltpu.CompilerParams(
            dimension_semantics=("parallel",),   # batch tiles shard on v7x's 2 TCs
            vmem_limit_bytes=vmem_limit),
        cost_estimate=pl.CostEstimate(
            flops=flops, transcendentals=0, bytes_accessed=bytes_accessed),
    )(tok, emb, w1, b1, w2p, b2p)

    return out[:B, :C]


def init_params(key, num_embeddings, embedding_dim, num_classes):
    k0, k1, k2, k3, k4 = jax.random.split(key, 5)
    scale = 1.0 / jnp.sqrt(jnp.float32(embedding_dim))
    return {
        "embedding": jax.random.normal(
            k0, (num_embeddings, embedding_dim), jnp.float32),
        # Linear weights stored as [in, out] (transpose of PyTorch's [out, in]).
        "w1": jax.random.uniform(k1, (embedding_dim, embedding_dim),
                                 jnp.float32, -scale, scale),
        "b1": jax.random.uniform(k2, (1, embedding_dim),
                                 jnp.float32, -scale, scale),
        "w2": jax.random.uniform(k3, (embedding_dim, num_classes),
                                 jnp.float32, -scale, scale),
        "b2": jax.random.uniform(k4, (1, num_classes),
                                 jnp.float32, -scale, scale),
    }


def reference_forward(token_ids, params):
    # Pure-JAX reference (same math as the PyTorch eval forward).
    emb = jnp.take(params["embedding"], token_ids, axis=0)
    out = emb.mean(axis=1)
    out = jnp.maximum(out @ params["w1"] + params["b1"][0], 0.0)
    out = out @ params["w2"] + params["b2"][0]
    return out


if __name__ == "__main__":
    B, S, D, C, V = 8, 16, 128, 8, 100

    key = jax.random.PRNGKey(0)
    kp, kt, kl = jax.random.split(key, 3)

    params = init_params(kp, num_embeddings=V, embedding_dim=D, num_classes=C)
    token_ids = jax.random.randint(kt, (B, S), 0, V, dtype=jnp.int32)
    seq_lens = jax.random.randint(kl, (B,), 1, S + 1, dtype=jnp.int32)

    ref = reference_forward(token_ids, params)

    # Path 1: embedding table VMEM-resident (default for small vocabularies).
    fwd = jax.jit(fasttext_forward)
    out = jax.block_until_ready(fwd(token_ids, seq_lens, params))
    assert out.shape == (B, C), out.shape
    assert jnp.allclose(out, ref, atol=2e-4, rtol=2e-4), (
        float(jnp.max(jnp.abs(out - ref))))

    # Path 2: table stays in HBM, deep-pipelined row gather (large-vocab fallback).
    fwd_hbm = jax.jit(functools.partial(fasttext_forward, force_hbm_gather=True))
    out_hbm = jax.block_until_ready(fwd_hbm(token_ids, seq_lens, params))
    assert out_hbm.shape == (B, C), out_hbm.shape
    assert jnp.allclose(out_hbm, ref, atol=2e-4, rtol=2e-4), (
        float(jnp.max(jnp.abs(out_hbm - ref))))

    print("KERNEL_OK")
</pallas_src>

<mosaic_0001>
module attributes {stable_mosaic.version = 11 : i64} {
  func.func @kernel(%arg0: i32, %arg1: memref<128xi32, #tpu.memory_space<smem>>, %arg2: memref<100x128xf32, #tpu.memory_space<vmem>>, %arg3: memref<128x128xf32, #tpu.memory_space<vmem>>, %arg4: memref<1x128xf32, #tpu.memory_space<vmem>>, %arg5: memref<128x128xf32, #tpu.memory_space<vmem>>, %arg6: memref<1x128xf32, #tpu.memory_space<vmem>>, %arg7: memref<8x128xf32, #tpu.memory_space<vmem>>, %arg8: memref<8x128xf32, #tpu.memory_space<vmem>>) attributes {dimension_semantics = [#tpu.dimension_semantics<parallel>], iteration_bounds = array<i64: 1>, scalar_prefetch = 1 : i64, scratch_operands = 1 : i64, tpu.core_type = #tpu.core_type<tc>, window_params = [{pipeline_mode = #tpu.pipeline_mode<synchronous>, transform_indices = @transform_0, window_bounds = array<i64: 100, 128>}, {pipeline_mode = #tpu.pipeline_mode<synchronous>, transform_indices = @transform_1, window_bounds = array<i64: 128, 128>}, {pipeline_mode = #tpu.pipeline_mode<synchronous>, transform_indices = @transform_2, window_bounds = array<i64: 1, 128>}, {pipeline_mode = #tpu.pipeline_mode<synchronous>, transform_indices = @transform_3, window_bounds = array<i64: 128, 128>}, {pipeline_mode = #tpu.pipeline_mode<synchronous>, transform_indices = @transform_4, window_bounds = array<i64: 1, 128>}, {transform_indices = @transform_5, window_bounds = array<i64: 8, 128>}]} {
    %c8_i32 = arith.constant 8 : i32
    %0 = arith.muli %arg0, %c8_i32 : i32
    %c8_i32_0 = arith.constant 8 : i32
    %1 = arith.subi %c8_i32_0, %0 : i32
    %c8_i32_1 = arith.constant 8 : i32
    %2 = arith.minsi %c8_i32_1, %1 : i32
    %c0_i32 = arith.constant 0 : i32
    %c0_i32_2 = arith.constant 0 : i32
    %3 = arith.subi %2, %c0_i32_2 : i32
    %4 = arith.addi %c0_i32_2, %3 : i32
    %c1_i32 = arith.constant 1 : i32
    scf.for %arg9 = %c0_i32_2 to %4 step %c1_i32  : i32 {
      %21 = arith.addi %0, %arg9 : i32
      %c16_i32 = arith.constant 16 : i32
      %22 = arith.muli %21, %c16_i32 : i32
      %cst_17 = arith.constant 0.000000e+00 : f32
      %23 = vector.broadcast %cst_17 : f32 to vector<1x128xf32>
      %c0_i32_18 = arith.constant 0 : i32
      %24 = arith.addi %22, %c0_i32_18 : i32
      %25 = arith.index_cast %24 : i32 to index
      %26 = memref.load %arg1[%25] : memref<128xi32, #tpu.memory_space<smem>>
      %27 = arith.index_cast %26 : i32 to index
      %c0_19 = arith.constant 0 : index
      %28 = vector.load %arg2[%27, %c0_19] : memref<100x128xf32, #tpu.memory_space<vmem>>, vector<1x128xf32>
      %29 = arith.addf %23, %28 : vector<1x128xf32>
      %c1_i32_20 = arith.constant 1 : i32
      %30 = arith.addi %22, %c1_i32_20 : i32
      %31 = arith.index_cast %30 : i32 to index
      %32 = memref.load %arg1[%31] : memref<128xi32, #tpu.memory_space<smem>>
      %33 = arith.index_cast %32 : i32 to index
      %c0_21 = arith.constant 0 : index
      %34 = vector.load %arg2[%33, %c0_21] : memref<100x128xf32, #tpu.memory_space<vmem>>, vector<1x128xf32>
      %35 = arith.addf %29, %34 : vector<1x128xf32>
      %c2_i32 = arith.constant 2 : i32
      %36 = arith.addi %22, %c2_i32 : i32
      %37 = arith.index_cast %36 : i32 to index
      %38 = memref.load %arg1[%37] : memref<128xi32, #tpu.memory_space<smem>>
      %39 = arith.index_cast %38 : i32 to index
      %c0_22 = arith.constant 0 : index
      %40 = vector.load %arg2[%39, %c0_22] : memref<100x128xf32, #tpu.memory_space<vmem>>, vector<1x128xf32>
      %41 = arith.addf %35, %40 : vector<1x128xf32>
      %c3_i32 = arith.constant 3 : i32
      %42 = arith.addi %22, %c3_i32 : i32
      %43 = arith.index_cast %42 : i32 to index
      %44 = memref.load %arg1[%43] : memref<128xi32, #tpu.memory_space<smem>>
      %45 = arith.index_cast %44 : i32 to index
      %c0_23 = arith.constant 0 : index
      %46 = vector.load %arg2[%45, %c0_23] : memref<100x128xf32, #tpu.memory_space<vmem>>, vector<1x128xf32>
      %47 = arith.addf %41, %46 : vector<1x128xf32>
      %c4_i32 = arith.constant 4 : i32
      %48 = arith.addi %22, %c4_i32 : i32
      %49 = arith.index_cast %48 : i32 to index
      %50 = memref.load %arg1[%49] : memref<128xi32, #tpu.memory_space<smem>>
      %51 = arith.index_cast %50 : i32 to index
      %c0_24 = arith.constant 0 : index
      %52 = vector.load %arg2[%51, %c0_24] : memref<100x128xf32, #tpu.memory_space<vmem>>, vector<1x128xf32>
      %53 = arith.addf %47, %52 : vector<1x128xf32>
      %c5_i32 = arith.constant 5 : i32
      %54 = arith.addi %22, %c5_i32 : i32
      %55 = arith.index_cast %54 : i32 to index
      %56 = memref.load %arg1[%55] : memref<128xi32, #tpu.memory_space<smem>>
      %57 = arith.index_cast %56 : i32 to index
      %c0_25 = arith.constant 0 : index
      %58 = vector.load %arg2[%57, %c0_25] : memref<100x128xf32, #tpu.memory_space<vmem>>, vector<1x128xf32>
      %59 = arith.addf %53, %58 : vector<1x128xf32>
      %c6_i32 = arith.constant 6 : i32
      %60 = arith.addi %22, %c6_i32 : i32
      %61 = arith.index_cast %60 : i32 to index
      %62 = memref.load %arg1[%61] : memref<128xi32, #tpu.memory_space<smem>>
      %63 = arith.index_cast %62 : i32 to index
      %c0_26 = arith.constant 0 : index
      %64 = vector.load %arg2[%63, %c0_26] : memref<100x128xf32, #tpu.memory_space<vmem>>, vector<1x128xf32>
      %65 = arith.addf %59, %64 : vector<1x128xf32>
      %c7_i32 = arith.constant 7 : i32
      %66 = arith.addi %22, %c7_i32 : i32
      %67 = arith.index_cast %66 : i32 to index
      %68 = memref.load %arg1[%67] : memref<128xi32, #tpu.memory_space<smem>>
      %69 = arith.index_cast %68 : i32 to index
      %c0_27 = arith.constant 0 : index
      %70 = vector.load %arg2[%69, %c0_27] : memref<100x128xf32, #tpu.memory_space<vmem>>, vector<1x128xf32>
      %71 = arith.addf %65, %70 : vector<1x128xf32>
      %c8_i32_28 = arith.constant 8 : i32
      %72 = arith.addi %22, %c8_i32_28 : i32
      %73 = arith.index_cast %72 : i32 to index
      %74 = memref.load %arg1[%73] : memref<128xi32, #tpu.memory_space<smem>>
      %75 = arith.index_cast %74 : i32 to index
      %c0_29 = arith.constant 0 : index
      %76 = vector.load %arg2[%75, %c0_29] : memref<100x128xf32, #tpu.memory_space<vmem>>, vector<1x128xf32>
      %77 = arith.addf %71, %76 : vector<1x128xf32>
      %c9_i32 = arith.constant 9 : i32
      %78 = arith.addi %22, %c9_i32 : i32
      %79 = arith.index_cast %78 : i32 to index
      %80 = memref.load %arg1[%79] : memref<128xi32, #tpu.memory_space<smem>>
      %81 = arith.index_cast %80 : i32 to index
      %c0_30 = arith.constant 0 : index
      %82 = vector.load %arg2[%81, %c0_30] : memref<100x128xf32, #tpu.memory_space<vmem>>, vector<1x128xf32>
      %83 = arith.addf %77, %82 : vector<1x128xf32>
      %c10_i32 = arith.constant 10 : i32
      %84 = arith.addi %22, %c10_i32 : i32
      %85 = arith.index_cast %84 : i32 to index
      %86 = memref.load %arg1[%85] : memref<128xi32, #tpu.memory_space<smem>>
      %87 = arith.index_cast %86 : i32 to index
      %c0_31 = arith.constant 0 : index
      %88 = vector.load %arg2[%87, %c0_31] : memref<100x128xf32, #tpu.memory_space<vmem>>, vector<1x128xf32>
      %89 = arith.addf %83, %88 : vector<1x128xf32>
      %c11_i32 = arith.constant 11 : i32
      %90 = arith.addi %22, %c11_i32 : i32
      %91 = arith.index_cast %90 : i32 to index
      %92 = memref.load %arg1[%91] : memref<128xi32, #tpu.memory_space<smem>>
      %93 = arith.index_cast %92 : i32 to index
      %c0_32 = arith.constant 0 : index
      %94 = vector.load %arg2[%93, %c0_32] : memref<100x128xf32, #tpu.memory_space<vmem>>, vector<1x128xf32>
      %95 = arith.addf %89, %94 : vector<1x128xf32>
      %c12_i32 = arith.constant 12 : i32
      %96 = arith.addi %22, %c12_i32 : i32
      %97 = arith.index_cast %96 : i32 to index
      %98 = memref.load %arg1[%97] : memref<128xi32, #tpu.memory_space<smem>>
      %99 = arith.index_cast %98 : i32 to index
      %c0_33 = arith.constant 0 : index
      %100 = vector.load %arg2[%99, %c0_33] : memref<100x128xf32, #tpu.memory_space<vmem>>, vector<1x128xf32>
      %101 = arith.addf %95, %100 : vector<1x128xf32>
      %c13_i32 = arith.constant 13 : i32
      %102 = arith.addi %22, %c13_i32 : i32
      %103 = arith.index_cast %102 : i32 to index
      %104 = memref.load %arg1[%103] : memref<128xi32, #tpu.memory_space<smem>>
      %105 = arith.index_cast %104 : i32 to index
      %c0_34 = arith.constant 0 : index
      %106 = vector.load %arg2[%105, %c0_34] : memref<100x128xf32, #tpu.memory_space<vmem>>, vector<1x128xf32>
      %107 = arith.addf %101, %106 : vector<1x128xf32>
      %c14_i32 = arith.constant 14 : i32
      %108 = arith.addi %22, %c14_i32 : i32
      %109 = arith.index_cast %108 : i32 to index
      %110 = memref.load %arg1[%109] : memref<128xi32, #tpu.memory_space<smem>>
      %111 = arith.index_cast %110 : i32 to index
      %c0_35 = arith.constant 0 : index
      %112 = vector.load %arg2[%111, %c0_35] : memref<100x128xf32, #tpu.memory_space<vmem>>, vector<1x128xf32>
      %113 = arith.addf %107, %112 : vector<1x128xf32>
      %c15_i32 = arith.constant 15 : i32
      %114 = arith.addi %22, %c15_i32 : i32
      %115 = arith.index_cast %114 : i32 to index
      %116 = memref.load %arg1[%115] : memref<128xi32, #tpu.memory_space<smem>>
      %117 = arith.index_cast %116 : i32 to index
      %c0_36 = arith.constant 0 : index
      %118 = vector.load %arg2[%117, %c0_36] : memref<100x128xf32, #tpu.memory_space<vmem>>, vector<1x128xf32>
      %119 = arith.addf %113, %118 : vector<1x128xf32>
      %c16_i32_37 = arith.constant 16 : i32
      %120 = arith.index_cast %arg9 : i32 to index
      %c0_38 = arith.constant 0 : index
      %121 = vector.load %arg8[%120, %c0_38] : memref<8x128xf32, #tpu.memory_space<vmem>>, vector<1x128xf32>
      tpu.vector_store %arg8[%120, %c0_38], %119 {strides = array<i32>} : memref<8x128xf32, #tpu.memory_space<vmem>>, vector<1x128xf32>,
    }
    %c0 = arith.constant 0 : index
    %c0_3 = arith.constant 0 : index
    %5 = vector.load %arg8[%c0, %c0_3] : memref<8x128xf32, #tpu.memory_space<vmem>>, vector<8x128xf32>
    %cst = arith.constant 6.250000e-02 : f32
    %6 = vector.broadcast %cst : f32 to vector<8x128xf32>
    %7 = arith.mulf %5, %6 : vector<8x128xf32>
    %c0_4 = arith.constant 0 : index
    %c0_5 = arith.constant 0 : index
    %8 = vector.load %arg3[%c0_4, %c0_5] : memref<128x128xf32, #tpu.memory_space<vmem>>, vector<128x128xf32>
    %cst_6 = arith.constant dense<0.000000e+00> : vector<8x128xf32>
    %9 = tpu.matmul %7, %8, %cst_6 {dimension_numbers = #tpu.dot_dimension_numbers<[1], [0], [0], [1], [0, 0, 1, 1], [], []>} : vector<8x128xf32>, vector<128x128xf32>, vector<8x128xf32> -> vector<8x128xf32>
    %c0_7 = arith.constant 0 : index
    %c0_8 = arith.constant 0 : index
    %10 = vector.load %arg4[%c0_7, %c0_8] : memref<1x128xf32, #tpu.memory_space<vmem>>, vector<1x128xf32>
    %11 = vector.broadcast %10 : vector<1x128xf32> to vector<8x128xf32>
    %12 = arith.addf %9, %11 : vector<8x128xf32>
    %cst_9 = arith.constant 0.000000e+00 : f32
    %13 = vector.broadcast %cst_9 : f32 to vector<8x128xf32>
    %14 = arith.maximumf %12, %13 : vector<8x128xf32>
    %c0_10 = arith.constant 0 : index
    %c0_11 = arith.constant 0 : index
    %15 = vector.load %arg5[%c0_10, %c0_11] : memref<128x128xf32, #tpu.memory_space<vmem>>, vector<128x128xf32>
    %cst_12 = arith.constant dense<0.000000e+00> : vector<8x128xf32>
    %16 = tpu.matmul %14, %15, %cst_12 {dimension_numbers = #tpu.dot_dimension_numbers<[1], [0], [0], [1], [0, 0, 1, 1], [], []>} : vector<8x128xf32>, vector<128x128xf32>, vector<8x128xf32> -> vector<8x128xf32>
    %c0_13 = arith.constant 0 : index
    %c0_14 = arith.constant 0 : index
    %17 = vector.load %arg6[%c0_13, %c0_14] : memref<1x128xf32, #tpu.memory_space<vmem>>, vector<1x128xf32>
    %18 = vector.broadcast %17 : vector<1x128xf32> to vector<8x128xf32>
    %19 = arith.addf %16, %18 : vector<8x128xf32>
    %c0_15 = arith.constant 0 : index
    %c0_16 = arith.constant 0 : index
    %20 = vector.load %arg7[%c0_15, %c0_16] : memref<8x128xf32, #tpu.memory_space<vmem>>, vector<8x128xf32>
    tpu.vector_store %arg7[%c0_15, %c0_16], %19 {strides = array<i32>} : memref<8x128xf32, #tpu.memory_space<vmem>>, vector<8x128xf32>,
    return
  }
  func.func @transform_0(%arg0: i32, %arg1: memref<128xi32, #tpu.memory_space<smem>>) -> (i32, i32) {
    %c0_i32 = arith.constant 0 : i32
    %c0_i32_0 = arith.constant 0 : i32
    %c0_i32_1 = arith.constant 0 : i32
    return %c0_i32, %c0_i32_0 : i32, i32
  }
  func.func @transform_1(%arg0: i32, %arg1: memref<128xi32, #tpu.memory_space<smem>>) -> (i32, i32) {
    %c0_i32 = arith.constant 0 : i32
    %c0_i32_0 = arith.constant 0 : i32
    %c0_i32_1 = arith.constant 0 : i32
    return %c0_i32, %c0_i32_0 : i32, i32
  }
  func.func @transform_2(%arg0: i32, %arg1: memref<128xi32, #tpu.memory_space<smem>>) -> (i32, i32) {
    %c0_i32 = arith.constant 0 : i32
    %c0_i32_0 = arith.constant 0 : i32
    %c0_i32_1 = arith.constant 0 : i32
    return %c0_i32, %c0_i32_0 : i32, i32
  }
  func.func @transform_3(%arg0: i32, %arg1: memref<128xi32, #tpu.memory_space<smem>>) -> (i32, i32) {
    %c0_i32 = arith.constant 0 : i32
    %c0_i32_0 = arith.constant 0 : i32
    %c0_i32_1 = arith.constant 0 : i32
    return %c0_i32, %c0_i32_0 : i32, i32
  }
  func.func @transform_4(%arg0: i32, %arg1: memref<128xi32, #tpu.memory_space<smem>>) -> (i32, i32) {
    %c0_i32 = arith.constant 0 : i32
    %c0_i32_0 = arith.constant 0 : i32
    %c0_i32_1 = arith.constant 0 : i32
    return %c0_i32, %c0_i32_0 : i32, i32
  }
  func.func @transform_5(%arg0: i32, %arg1: memref<128xi32, #tpu.memory_space<smem>>) -> (i32, i32) {
    %c0_i32 = arith.constant 0 : i32
    %c0_i32_0 = arith.constant 0 : i32
    return %arg0, %c0_i32 : i32, i32
  }
}

</mosaic_0001>

<llo_original>
// kernel: fasttext_forward.1
$region0: #{fasttext_forward.1}
  #allocation0 [shape = 'u32[]', space=smem, size = 0x4, offset = 0x4, fixed_abs, tag = 'smem constant byte address 0x4 - core index']
  #allocation1 [shape = 'u32[144,128]{1,0:T(1,128)}', space=vmem, size = 0x12000, scoped, tag = 'internal scratch']
  #allocation2 [shape = 'f32[8,128]{1,0:T(8,128)}', space=vmem, size = 0x1000, scoped, tag = 'scratch operand']
  #allocation3 [shape = 's32[1]{0}', space=sflag, size = 0x4, scoped, tag = 'scoped memory for fasttext_forward.1']
  #allocation4 [shape = 'u8[512]{0}', space=smem, size = 0x200, scoped, tag = 'prefetched SMEM operand 0']
  %s0 = inlined_call_operand.vmem [shape: s32[128], index: 0, kind: input, shape index: {}]
  %s1 = inlined_call_operand.vmem [shape: f32[100,128], index: 1, kind: input, shape index: {}]
  %s2 = inlined_call_operand.vmem [shape: f32[128,128], index: 2, kind: input, shape index: {}]
  %s3 = inlined_call_operand.vmem [shape: f32[1,128], index: 3, kind: input, shape index: {}]
  %s4 = inlined_call_operand.vmem [shape: f32[128,128], index: 4, kind: input, shape index: {}]
  %s5 = inlined_call_operand.vmem [shape: f32[1,128], index: 5, kind: input, shape index: {}]
  %s6 = inlined_call_operand.hbm [shape: f32[8,128], index: 6, kind: output, shape index: {}]
  %s7 = sld [smem:[#allocation0]]
  $region37: #{fasttext_forward.1} parent=0
    _
  %s9 = ssub.s32 1, %s7
  %s10 = scalar_select 0, %s9, %s7
  %s11 = sshll.u32 %s0, 4
  %s12 = int_to_ptr.vmem [resolvable:$true] %s11
  %14 = dma.vmem_to_smem %s12, 16, [#allocation4], [#allocation3]
  %15 = dma.done [#allocation3], 16
  %16 = sfence
  $region1: #{fasttext_forward.1} parent=0
    #allocation5 [shape = 'u8[4096]{0}', space=vmem, size = 0x1000, scoped, tag = 'output window, operand 0, single buffered']
    #allocation6 [shape = 's32[1]{0}', space=sflag, size = 0x4, scoped, tag = 'scoped memory for fasttext_forward.1']
    %17 = vsyncpa [#allocation6], 0
    // Predicated region
    $region2: #{fasttext_forward.1} parent=1 // pred_check
      _
    $region3: #{fasttext_forward.1} parent=1 // pred_check_branch
      %19 = sbr.rel (0) target = $region5
    $region4: #{fasttext_forward.1} parent=1 // pred_region
      _
    $region5: #{fasttext_forward.1} parent=1 // pred_fallthru
      _
    // Predicated region
    $region6: #{fasttext_forward.1} parent=1 // pred_check
      _
    $region7: #{fasttext_forward.1} parent=1 // pred_check_branch
      %21 = sbr.rel (0) target = $region9
    $region8: #{fasttext_forward.1} parent=1 // pred_region
      _
    $region9: #{fasttext_forward.1} parent=1 // pred_fallthru
      _
    // Predicated region
    $region10: #{fasttext_forward.1} parent=1 // pred_check
      _
    $region11: #{fasttext_forward.1} parent=1 // pred_check_branch
      %23 = sbr.rel (0) target = $region13
    $region12: #{fasttext_forward.1} parent=1 // pred_region
      _
    $region13: #{fasttext_forward.1} parent=1 // pred_fallthru
      _
    // Predicated region
    $region14: #{fasttext_forward.1} parent=1 // pred_check
      _
    $region15: #{fasttext_forward.1} parent=1 // pred_check_branch
      %25 = sbr.rel (0) target = $region17
    $region16: #{fasttext_forward.1} parent=1 // pred_region
      _
    $region17: #{fasttext_forward.1} parent=1 // pred_fallthru
      _
    // Predicated region
    $region18: #{fasttext_forward.1} parent=1 // pred_check
      _
    $region19: #{fasttext_forward.1} parent=1 // pred_check_branch
      %27 = sbr.rel (0) target = $region21
    $region20: #{fasttext_forward.1} parent=1 // pred_region
      _
    $region21: #{fasttext_forward.1} parent=1 // pred_fallthru
      _
    %s28 = smul.u32 0, 8
    %s29 = ssub.s32 8, %s28
    %p30 = scmp.lt.s32.totalorder %s29, 8
    %s31 = scalar_select %p30, %s29, 8
    // While loop
    $region22: #{fasttext_forward.1} parent=1 // loop_pre_header
      _
    $region23: #{fasttext_forward.1} parent=1 // loop_header
      %s33 = sphi 0, %s35
      %p34 = scmp.ge.s32.totalorder %s33, %s31
    $region24: #{fasttext_forward.1} parent=1 // loop_header_branch
      %37 = sbr.rel (%p34) target = $region28
    $region25: #{fasttext_forward.1} parent=1 // loop_body
      %s38 = sadd.s32 %s28, %s33
      %s39 = smul.u32 %s38, 16
      %s40 = sld [smem:[#allocation4 + %s39]]
      %s41 = scalar_lea.vmem %s1, %s40
      %v42 = vld [vmem:[%s41] sm:$0x1]
      %v43 = vadd.f32 %v42, 0.0
      %s44 = sadd.s32 %s39, 1
      %s45 = sld [smem:[#allocation4 + %s44]]
      %s46 = scalar_lea.vmem %s1, %s45
      %v47 = vld [vmem:[%s46] sm:$0x1]
      %v48 = vadd.f32 %v43, %v47
      %s49 = sadd.s32 %s39, 2
      %s50 = sld [smem:[#allocation4 + %s49]]
      %s51 = scalar_lea.vmem %s1, %s50
      %v52 = vld [vmem:[%s51] sm:$0x1]
      %v53 = vadd.f32 %v48, %v52
      %s54 = sadd.s32 %s39, 3
      %s55 = sld [smem:[#allocation4 + %s54]]
      %s56 = scalar_lea.vmem %s1, %s55
      %v57 = vld [vmem:[%s56] sm:$0x1]
      %v58 = vadd.f32 %v53, %v57
      %s59 = sadd.s32 %s39, 4
      %s60 = sld [smem:[#allocation4 + %s59]]
      %s61 = scalar_lea.vmem %s1, %s60
      %v62 = vld [vmem:[%s61] sm:$0x1]
      %v63 = vadd.f32 %v58, %v62
      %s64 = sadd.s32 %s39, 5
      %s65 = sld [smem:[#allocation4 + %s64]]
      %s66 = scalar_lea.vmem %s1, %s65
      %v67 = vld [vmem:[%s66] sm:$0x1]
      %v68 = vadd.f32 %v63, %v67
      %s69 = sadd.s32 %s39, 6
      %s70 = sld [smem:[#allocation4 + %s69]]
      %s71 = scalar_lea.vmem %s1, %s70
      %v72 = vld [vmem:[%s71] sm:$0x1]
      %v73 = vadd.f32 %v68, %v72
      %s74 = sadd.s32 %s39, 7
      %s75 = sld [smem:[#allocation4 + %s74]]
      %s76 = scalar_lea.vmem %s1, %s75
      %v77 = vld [vmem:[%s76] sm:$0x1]
      %v78 = vadd.f32 %v73, %v77
      %s79 = sadd.s32 %s39, 8
      %s80 = sld [smem:[#allocation4 + %s79]]
      %s81 = scalar_lea.vmem %s1, %s80
      %v82 = vld [vmem:[%s81] sm:$0x1]
      %v83 = vadd.f32 %v78, %v82
      %s84 = sadd.s32 %s39, 9
      %s85 = sld [smem:[#allocation4 + %s84]]
      %s86 = scalar_lea.vmem %s1, %s85
      %v87 = vld [vmem:[%s86] sm:$0x1]
      %v88 = vadd.f32 %v83, %v87
      %s89 = sadd.s32 %s39, 10
      %s90 = sld [smem:[#allocation4 + %s89]]
      %s91 = scalar_lea.vmem %s1, %s90
      %v92 = vld [vmem:[%s91] sm:$0x1]
      %v93 = vadd.f32 %v88, %v92
      %s94 = sadd.s32 %s39, 11
      %s95 = sld [smem:[#allocation4 + %s94]]
      %s96 = scalar_lea.vmem %s1, %s95
      %v97 = vld [vmem:[%s96] sm:$0x1]
      %v98 = vadd.f32 %v93, %v97
      %s99 = sadd.s32 %s39, 12
      %s100 = sld [smem:[#allocation4 + %s99]]
      %s101 = scalar_lea.vmem %s1, %s100
      %v102 = vld [vmem:[%s101] sm:$0x1]
      %v103 = vadd.f32 %v98, %v102
      %s104 = sadd.s32 %s39, 13
      %s105 = sld [smem:[#allocation4 + %s104]]
      %s106 = scalar_lea.vmem %s1, %s105
      %v107 = vld [vmem:[%s106] sm:$0x1]
      %v108 = vadd.f32 %v103, %v107
      %s109 = sadd.s32 %s39, 14
      %s110 = sld [smem:[#allocation4 + %s109]]
      %s111 = scalar_lea.vmem %s1, %s110
      %v112 = vld [vmem:[%s111] sm:$0x1]
      %v113 = vadd.f32 %v108, %v112
      %s114 = sadd.s32 %s39, 15
      %s115 = sld [smem:[#allocation4 + %s114]]
      %s116 = scalar_lea.vmem %s1, %s115
      %v117 = vld [vmem:[%s116] sm:$0x1]
      %v118 = vadd.f32 %v113, %v117
      %s119 = scalar_lea.vmem [#allocation2], %s33
      %120 = vst [vmem:[%s119] sm:$0x1] %v118
    $region26: #{fasttext_forward.1} parent=1 // loop_footer
      %s35 = sadd.s32 %s33, 1
    $region27: #{fasttext_forward.1} parent=1 // loop_footer_branch
      %32 = sbr.rel target = $region23
    $region28: #{fasttext_forward.1} parent=1 // loop_exit
      _
    %v121 = vld [vmem:[#allocation2] sm:$0xff]
    %v122 = vmul.f32 %v121, 0.0625
    %v123 = vld [vmem:[%s2] sm:$0xff]
    %v124 = vld [vmem:[%s2 + $0x8] sm:$0xff]
    %v125 = vld [vmem:[%s2 + $0x10] sm:$0xff]
    %v126 = vld [vmem:[%s2 + $0x18] sm:$0xff]
    %v127 = vld [vmem:[%s2 + $0x20] sm:$0xff]
    %v128 = vld [vmem:[%s2 + $0x28] sm:$0xff]
    %v129 = vld [vmem:[%s2 + $0x30] sm:$0xff]
    %v130 = vld [vmem:[%s2 + $0x38] sm:$0xff]
    %v131 = vld [vmem:[%s2 + $0x40] sm:$0xff]
    %v132 = vld [vmem:[%s2 + $0x48] sm:$0xff]
    %v133 = vld [vmem:[%s2 + $0x50] sm:$0xff]
    %v134 = vld [vmem:[%s2 + $0x58] sm:$0xff]
    %v135 = vld [vmem:[%s2 + $0x60] sm:$0xff]
    %v136 = vld [vmem:[%s2 + $0x68] sm:$0xff]
    %v137 = vld [vmem:[%s2 + $0x70] sm:$0xff]
    %v138 = vld [vmem:[%s2 + $0x78] sm:$0xff]
    %v139 = vld [vmem:[%s3] sm:$0x1]
    %v141 = vlaneseq
    %v142 = vshrl.u32 %v141, 7
    %v143 = vsub.s32 0, %v142
    %v144 = vrot.slane %v139, %v143
    %146 = vmatprep.subr.mxu0 0.0
    %147 = vmatpush1.msra.mxu0 %v123
    %148 = vmatprep.subr.mxu0 0.0
    %149 = vmatpush1.msra.mxu0 %v124
    %150 = vmatprep.subr.mxu0 0.0
    %151 = vmatpush1.msra.mxu0 %v125
    %152 = vmatprep.subr.mxu0 0.0
    %153 = vmatpush1.msra.mxu0 %v126
    %154 = vmatprep.subr.mxu0 0.0
    %155 = vmatpush1.msra.mxu0 %v127
    %156 = vmatprep.subr.mxu0 0.0
    %157 = vmatpush1.msra.mxu0 %v128
    %158 = vmatprep.subr.mxu0 0.0
    %159 = vmatpush1.msra.mxu0 %v129
    %160 = vmatprep.subr.mxu0 0.0
    %161 = vmatpush1.msra.mxu0 %v130
    %162 = vmatprep.subr.mxu0 0.0
    %163 = vmatpush1.msra.mxu0 %v131
    %164 = vmatprep.subr.mxu0 0.0
    %165 = vmatpush1.msra.mxu0 %v132
    %166 = vmatprep.subr.mxu0 0.0
    %167 = vmatpush1.msra.mxu0 %v133
    %168 = vmatprep.subr.mxu0 0.0
    %169 = vmatpush1.msra.mxu0 %v134
    %170 = vmatprep.subr.mxu0 0.0
    %171 = vmatpush1.msra.mxu0 %v135
    %172 = vmatprep.subr.mxu0 0.0
    %173 = vmatpush1.msra.mxu0 %v136
    %174 = vmatprep.subr.mxu0 0.0
    %175 = vmatpush1.msra.mxu0 %v137
    %176 = vmatprep.subr.mxu0 0.0
    %177 = vmatpush1.msra.mxu0 %v138
    %178 = vmatprep.subr.mxu0 0.0
    %179 = vmatpush1.msra.mxu0 0.0
    %180 = vmatprep.subr.mxu0 0.0
    %181 = vmatpush1.msra.mxu0 0.0
    %182 = vmatprep.subr.mxu0 0.0
    %183 = vmatpush1.msra.mxu0 0.0
    %184 = vmatprep.subr.mxu0 0.0
    %185 = vmatpush1.msra.mxu0 0.0
    %186 = vmatprep.subr.mxu0 0.0
    %187 = vmatpush1.msra.mxu0 0.0
    %188 = vmatprep.subr.mxu0 0.0
    %189 = vmatpush1.msra.mxu0 0.0
    %190 = vmatprep.subr.mxu0 0.0
    %191 = vmatpush1.msra.mxu0 0.0
    %192 = vmatprep.subr.mxu0 0.0
    %193 = vmatpush1.msra.mxu0 0.0
    %194 = vmatprep.subr.mxu0 0.0
    %195 = vmatpush1.msra.mxu0 0.0
    %196 = vmatprep.subr.mxu0 0.0
    %197 = vmatpush1.msra.mxu0 0.0
    %198 = vmatprep.subr.mxu0 0.0
    %199 = vmatpush1.msra.mxu0 0.0
    %200 = vmatprep.subr.mxu0 0.0
    %201 = vmatpush1.msra.mxu0 0.0
    %202 = vmatprep.subr.mxu0 0.0
    %203 = vmatpush1.msra.mxu0 0.0
    %204 = vmatprep.subr.mxu0 0.0
    %205 = vmatpush1.msra.mxu0 0.0
    %206 = vmatprep.subr.mxu0 0.0
    %207 = vmatpush1.msra.mxu0 0.0
    %208 = vmatprep.subr.mxu0 0.0
    %209 = vmatpush1.msra.mxu0 0.0
    %210 = vmatprep.mubr.f32.mxu0 0.0
    %211 = vmatmul.mubr.f32.gmra.mrb[0].mxu0 %v122
    %v212 = vpop.f32.mrb[0].mxu0
    %v213 = vadd.f32 %v144, %v212
    %v214 = vpop.f32.mrb[0].mxu0
    %215 = vdwg.mxu0
    %v216 = vmax.f32 %v213, 0.0
    %v217 = vld [vmem:[%s4] sm:$0xff]
    %v218 = vld [vmem:[%s4 + $0x8] sm:$0xff]
    %v219 = vld [vmem:[%s4 + $0x10] sm:$0xff]
    %v220 = vld [vmem:[%s4 + $0x18] sm:$0xff]
    %v221 = vld [vmem:[%s4 + $0x20] sm:$0xff]
    %v222 = vld [vmem:[%s4 + $0x28] sm:$0xff]
    %v223 = vld [vmem:[%s4 + $0x30] sm:$0xff]
    %v224 = vld [vmem:[%s4 + $0x38] sm:$0xff]
    %v225 = vld [vmem:[%s4 + $0x40] sm:$0xff]
    %v226 = vld [vmem:[%s4 + $0x48] sm:$0xff]
    %v227 = vld [vmem:[%s4 + $0x50] sm:$0xff]
    %v228 = vld [vmem:[%s4 + $0x58] sm:$0xff]
    %v229 = vld [vmem:[%s4 + $0x60] sm:$0xff]
    %v230 = vld [vmem:[%s4 + $0x68] sm:$0xff]
    %v231 = vld [vmem:[%s4 + $0x70] sm:$0xff]
    %v232 = vld [vmem:[%s4 + $0x78] sm:$0xff]
    %v233 = vld [vmem:[%s5] sm:$0x1]
    %v235 = vlaneseq
    %v236 = vshrl.u32 %v235, 7
    %v237 = vsub.s32 0, %v236
    %v238 = vrot.slane %v233, %v237
    %240 = vmatprep.subr.mxu0 0.0
    %241 = vmatpush1.msra.mxu0 %v217
    %242 = vmatprep.subr.mxu0 0.0
    %243 = vmatpush1.msra.mxu0 %v218
    %244 = vmatprep.subr.mxu0 0.0
    %245 = vmatpush1.msra.mxu0 %v219
    %246 = vmatprep.subr.mxu0 0.0
    %247 = vmatpush1.msra.mxu0 %v220
    %248 = vmatprep.subr.mxu0 0.0
    %249 = vmatpush1.msra.mxu0 %v221
    %250 = vmatprep.subr.mxu0 0.0
    %251 = vmatpush1.msra.mxu0 %v222
    %252 = vmatprep.subr.mxu0 0.0
    %253 = vmatpush1.msra.mxu0 %v223
    %254 = vmatprep.subr.mxu0 0.0
    %255 = vmatpush1.msra.mxu0 %v224
    %256 = vmatprep.subr.mxu0 0.0
    %257 = vmatpush1.msra.mxu0 %v225
    %258 = vmatprep.subr.mxu0 0.0
    %259 = vmatpush1.msra.mxu0 %v226
    %260 = vmatprep.subr.mxu0 0.0
    %261 = vmatpush1.msra.mxu0 %v227
    %262 = vmatprep.subr.mxu0 0.0
    %263 = vmatpush1.msra.mxu0 %v228
    %264 = vmatprep.subr.mxu0 0.0
    %265 = vmatpush1.msra.mxu0 %v229
    %266 = vmatprep.subr.mxu0 0.0
    %267 = vmatpush1.msra.mxu0 %v230
    %268 = vmatprep.subr.mxu0 0.0
    %269 = vmatpush1.msra.mxu0 %v231
    %270 = vmatprep.subr.mxu0 0.0
    %271 = vmatpush1.msra.mxu0 %v232
    %272 = vmatprep.subr.mxu0 0.0
    %273 = vmatpush1.msra.mxu0 0.0
    %274 = vmatprep.subr.mxu0 0.0
    %275 = vmatpush1.msra.mxu0 0.0
    %276 = vmatprep.subr.mxu0 0.0
    %277 = vmatpush1.msra.mxu0 0.0
    %278 = vmatprep.subr.mxu0 0.0
    %279 = vmatpush1.msra.mxu0 0.0
    %280 = vmatprep.subr.mxu0 0.0
    %281 = vmatpush1.msra.mxu0 0.0
    %282 = vmatprep.subr.mxu0 0.0
    %283 = vmatpush1.msra.mxu0 0.0
    %284 = vmatprep.subr.mxu0 0.0
    %285 = vmatpush1.msra.mxu0 0.0
    %286 = vmatprep.subr.mxu0 0.0
    %287 = vmatpush1.msra.mxu0 0.0
    %288 = vmatprep.subr.mxu0 0.0
    %289 = vmatpush1.msra.mxu0 0.0
    %290 = vmatprep.subr.mxu0 0.0
    %291 = vmatpush1.msra.mxu0 0.0
    %292 = vmatprep.subr.mxu0 0.0
    %293 = vmatpush1.msra.mxu0 0.0
    %294 = vmatprep.subr.mxu0 0.0
    %295 = vmatpush1.msra.mxu0 0.0
    %296 = vmatprep.subr.mxu0 0.0
    %297 = vmatpush1.msra.mxu0 0.0
    %298 = vmatprep.subr.mxu0 0.0
    %299 = vmatpush1.msra.mxu0 0.0
    %300 = vmatprep.subr.mxu0 0.0
    %301 = vmatpush1.msra.mxu0 0.0
    %302 = vmatprep.subr.mxu0 0.0
    %303 = vmatpush1.msra.mxu0 0.0
    %304 = vmatprep.mubr.f32.mxu0 0.0
    %305 = vmatmul.mubr.f32.gmra.mrb[0].mxu0 %v216
    %v306 = vpop.f32.mrb[0].mxu0
    %v307 = vadd.f32 %v238, %v306
    %v308 = vpop.f32.mrb[0].mxu0
    %309 = vdwg.mxu0
    %310 = vst [vmem:[#allocation5] sm:$0xff] %v307
    // Predicated region
    $region29: #{fasttext_forward.1} parent=1 // pred_check
      _
    $region30: #{fasttext_forward.1} parent=1 // pred_check_branch
      %312 = sbr.rel (0) target = $region32
    $region31: #{fasttext_forward.1} parent=1 // pred_region
      %s314 = ssub.s32 128, 128
      %315 = vsyncadd [#allocation6], %s314
      %s317 = sshll.u32 [#allocation5], 4
      %s318 = int_to_ptr.vmem [resolvable:$true] %s317
      %320 = dma.vmem_to_hbm [thread:$0]  %s318, 128, %s6, [#allocation6]
    $region32: #{fasttext_forward.1} parent=1 // pred_fallthru
      _
    // Predicated region
    $region33: #{fasttext_forward.1} parent=1 // pred_check
      _
    $region34: #{fasttext_forward.1} parent=1 // pred_check_branch
      %322 = sbr.rel (0) target = $region36
    $region35: #{fasttext_forward.1} parent=1 // pred_region
      %323 = dma.done [#allocation6], 128
    $region36: #{fasttext_forward.1} parent=1 // pred_fallthru
      _
    %324 = vsyncpa [#allocation6], 1

</llo_original>
